<compile_context>
chip_gen: v6e
topology: v6e:2x2x1
jax: 0.10.0
libtpu: 0.0.40
codegen_flags: <defaults>
</compile_context>

<pallas_src>
import functools

import numpy as np
import jax
import jax.numpy as jnp
from jax import lax
from jax.experimental import pallas as pl
from jax.experimental.pallas import tpu as pltpu


def _round_up(x, m):
    return ((x + m - 1) // m) * m


# ---------------------------------------------------------------------------
# Identity branch: out = x + y (tiled, lane-dense, pipelined elementwise add).
# ---------------------------------------------------------------------------
def _add_kernel(x_ref, y_ref, o_ref):
    o_ref[...] = (x_ref[...] + y_ref[...]).astype(o_ref.dtype)


def _elementwise_add(x, y):
    N, C, H, W = x.shape
    rows, cols = N * C, H * W
    out_dtype = jnp.result_type(x.dtype, y.dtype)
    x2 = x.reshape(rows, cols)
    y2 = y.reshape(rows, cols)

    # Lane block: multiple of 128 (or the full dim); row block: multiple of 8 (or
    # the full dim).  ~1 MiB per buffer keeps double-buffered in/out well under the
    # v5e 16 MiB scoped-VMEM default while tiles stay large enough for the HBM
    # roofline.  Both grid axes are "parallel" so v7x's two TensorCores share work.
    cb = cols if cols <= 2048 else 2048
    itemsize = max(x2.dtype.itemsize, y2.dtype.itemsize)
    rb = max(8, ((1 << 20) // (cb * itemsize)) // 8 * 8)
    if rb >= rows:
        rb = rows
    grid = (pl.cdiv(rows, rb), pl.cdiv(cols, cb))

    out = pl.pallas_call(
        _add_kernel,
        out_shape=jax.ShapeDtypeStruct((rows, cols), out_dtype),
        grid_spec=pltpu.PrefetchScalarGridSpec(
            num_scalar_prefetch=0,
            grid=grid,
            in_specs=[pl.BlockSpec((rb, cb), lambda i, j: (i, j)),
                      pl.BlockSpec((rb, cb), lambda i, j: (i, j))],
            out_specs=pl.BlockSpec((rb, cb), lambda i, j: (i, j)),
        ),
        compiler_params=pltpu.CompilerParams(
            dimension_semantics=("parallel", "parallel")),
    )(x2, y2)
    return out.reshape(N, C, H, W)


# ---------------------------------------------------------------------------
# Projection branch, subsample == 1: out = conv1x1(x) + b + y.
# ---------------------------------------------------------------------------
def _proj_add_kernel(x_ref, w_ref, b_ref, y_ref, o_ref, *, compute_dtype):
    # x_ref: (1, Cin, tHW), w_ref: (Cout, Cin), b_ref: (Cout, 1),
    # y_ref/o_ref: (1, Cout, tHW).  Operand casts happen here (free VPU work).
    acc = jnp.dot(w_ref[...].astype(compute_dtype),
                  x_ref[0].astype(compute_dtype),
                  preferred_element_type=jnp.float32)            # (Cout, tHW)
    acc = acc + b_ref[...].astype(jnp.float32) + y_ref[0].astype(jnp.float32)
    o_ref[0] = acc.astype(o_ref.dtype)


def _project_add(x, y, w2, b2, *, compute_dtype, out_dtype):
    N, Cin, H, W = x.shape
    Cout = w2.shape[0]
    HW = H * W
    x_flat = x.reshape(N, Cin, HW)          # free: spatial goes onto lanes
    y_flat = y.reshape(N, Cout, HW)

    # HW tile: multiple of 128 (lane-dense stores), bounded so the per-step
    # x + y + out blocks stay <= ~4 MiB (<= ~8 MiB double-buffered) -> safe on
    # v5e's 16 MiB scoped-VMEM default and v7x's 64 MiB physical VMEM.
    bytes_per_col = (Cin + 2 * Cout) * 4
    thw = min(2048, max(128, ((4 << 20) // bytes_per_col) // 128 * 128))
    if HW <= thw:
        thw = HW                            # full dim is always a legal block
    grid = (N, pl.cdiv(HW, thw))

    # Alias y (a fresh reshape buffer, never reused) to the output: no second
    # (N, Cout, HW) HBM allocation.
    alias = {3: 0} if y_flat.dtype == jnp.dtype(out_dtype) else {}

    out = pl.pallas_call(
        functools.partial(_proj_add_kernel, compute_dtype=compute_dtype),
        out_shape=jax.ShapeDtypeStruct((N, Cout, HW), out_dtype),
        grid_spec=pltpu.PrefetchScalarGridSpec(
            num_scalar_prefetch=0,
            grid=grid,
            in_specs=[
                pl.BlockSpec((1, Cin, thw), lambda n, h: (n, 0, h)),
                pl.BlockSpec((Cout, Cin), lambda n, h: (0, 0)),
                pl.BlockSpec((Cout, 1), lambda n, h: (0, 0)),
                pl.BlockSpec((1, Cout, thw), lambda n, h: (n, 0, h)),
            ],
            out_specs=pl.BlockSpec((1, Cout, thw), lambda n, h: (n, 0, h)),
        ),
        compiler_params=pltpu.CompilerParams(
            dimension_semantics=("parallel", "parallel")),
        input_output_aliases=alias,
    )(x_flat, w2, b2, y_flat)
    return out.reshape(N, Cout, H, W)


# ---------------------------------------------------------------------------
# Projection branch, subsample > 1: strided 1x1 conv + bias + y, reading the
# ORIGINAL x (no strided intermediate written to HBM).
# ---------------------------------------------------------------------------
def _proj_add_strided_kernel(x_ref, w_ref, b_ref, s_ref, y_ref, o_ref, *,
                             t_ho, subsample, compute_dtype):
    # x_ref: (1, Cin, t_ho*subsample, W)  full-resolution rows for this block
    # w_ref: (Cout, Cin); b_ref: (Cout, 1); s_ref: (W, Wo) 0/1 column selector
    # y_ref/o_ref: (1, Cout, t_ho, Wo)
    w = w_ref[...].astype(compute_dtype)
    sel = s_ref[...]                                   # built in compute_dtype
    b = b_ref[...].astype(jnp.float32)
    # Unrolled over the t_ho output rows: per row only vanilla 2-D matmuls and
    # basic (non-strided) ref indexing -> no lane-strided loads, no value reshapes.
    for j in range(t_ho):
        xj = x_ref[0, :, j * subsample, :].astype(compute_dtype)      # (Cin, W)
        xcj = jnp.dot(xj, sel, preferred_element_type=jnp.float32)    # (Cin, Wo)
        zj = jnp.dot(w, xcj.astype(compute_dtype),
                     preferred_element_type=jnp.float32)              # (Cout, Wo)
        o_ref[0, :, j, :] = (
            zj + b + y_ref[0, :, j, :].astype(jnp.float32)).astype(o_ref.dtype)


def _project_add_strided(x, y, w2, b2, subsample, *, compute_dtype, out_dtype):
    N, Cin, H, W = x.shape
    _, Cout, Ho, Wo = y.shape

    # 0/1 column-selection matrix: output column j takes input column j*subsample.
    sel = (jnp.arange(W, dtype=jnp.int32)[:, None]
           == (jnp.arange(Wo, dtype=jnp.int32) * subsample)[None, :]
           ).astype(compute_dtype)                                    # (W, Wo)

    # Row-block size: 8 output rows per grid step keeps every block dim legal under
    # the (8,128) tiling rule and the per-step x DMA a reasonable size.
    if Ho >= 8:
        t_ho = 8
    elif (Ho * subsample == H) or ((Ho * subsample) % 8 == 0):
        t_ho = Ho
    else:
        t_ho = 8                     # boundary block: padded reads, masked writes
    h_blk = t_ho * subsample
    grid = (N, pl.cdiv(Ho, t_ho))

    # NOTE: no input_output_aliases here - y is the caller's array (no reshape),
    # donating it would invalidate the caller's buffer under eager execution.
    out = pl.pallas_call(
        functools.partial(_proj_add_strided_kernel, t_ho=t_ho,
                          subsample=subsample, compute_dtype=compute_dtype),
        out_shape=jax.ShapeDtypeStruct((N, Cout, Ho, Wo), out_dtype),
        grid_spec=pltpu.PrefetchScalarGridSpec(
            num_scalar_prefetch=0,
            grid=grid,
            in_specs=[
                pl.BlockSpec((1, Cin, h_blk, W), lambda n, h: (n, 0, h, 0)),
                pl.BlockSpec((Cout, Cin), lambda n, h: (0, 0)),
                pl.BlockSpec((Cout, 1), lambda n, h: (0, 0)),
                pl.BlockSpec((W, Wo), lambda n, h: (0, 0)),
                pl.BlockSpec((1, Cout, t_ho, Wo), lambda n, h: (n, 0, h, 0)),
            ],
            out_specs=pl.BlockSpec((1, Cout, t_ho, Wo),
                                   lambda n, h: (n, 0, h, 0)),
        ),
        compiler_params=pltpu.CompilerParams(
            dimension_semantics=("parallel", "parallel")),
    )(x, w2, b2, sel, y)
    return out


# ---------------------------------------------------------------------------
# Public forward.
# ---------------------------------------------------------------------------
def shortcut_forward(x, y, *, in_filters, nb_filters, subsample=1,
                     conv_w=None, conv_b=None, mxu_dtype=None):
    """Forward pass of _shortcut.

    x: (N, in_filters, H, W), y: (N, nb_filters, Ho, Wo), NCHW.
    If in_filters != nb_filters or subsample != 1, applies the 1x1 projection conv
    (conv_w: (Cout, Cin, 1, 1), conv_b: (Cout,)) to x with stride=subsample and adds
    y; otherwise returns x + y.  Output dtype follows jnp.result_type(x, y).
    mxu_dtype=jnp.bfloat16 halves matmul-operand bytes on every TPU generation
    (v5e's MXU is also bf16-native; accumulation stays f32); the default (None) uses
    the input dtype and preserves the PyTorch module's numerics exactly.
    """
    process = (in_filters != nb_filters) or (subsample != 1)
    out_dtype = jnp.result_type(x.dtype, y.dtype)
    if not process:
        return _elementwise_add(x, y)

    assert conv_w is not None and conv_b is not None
    Cout, Cin = conv_w.shape[0], conv_w.shape[1]
    w2 = conv_w.reshape(Cout, Cin)
    b2 = conv_b.reshape(Cout, 1)
    compute_dtype = (jnp.dtype(mxu_dtype) if mxu_dtype is not None
                     else jnp.result_type(x.dtype, conv_w.dtype))

    if subsample == 1:
        return _project_add(x, y, w2, b2,
                            compute_dtype=compute_dtype, out_dtype=out_dtype)
    return _project_add_strided(x, y, w2, b2, subsample,
                                compute_dtype=compute_dtype, out_dtype=out_dtype)


def _reference(x, y, *, in_filters, nb_filters, subsample=1,
               conv_w=None, conv_b=None):
    """Pure-JAX reference for _shortcut.forward."""
    if in_filters != nb_filters or subsample != 1:
        y0 = lax.conv_general_dilated(
            x, conv_w, window_strides=(subsample, subsample), padding="VALID",
            dimension_numbers=("NCHW", "OIHW", "NCHW"))
        return y0 + conv_b[None, :, None, None] + y
    return x + y


if __name__ == "__main__":
    key = jax.random.PRNGKey(0)
    k1, k2, k3, k4, k5, k6 = jax.random.split(key, 6)

    N, H, W = 2, 16, 16
    Cin, Cout = 4, 8

    # Case 1: projection path (in_filters != nb_filters), subsample = 1.
    x1 = jax.random.normal(k1, (N, Cin, H, W), dtype=jnp.float32)
    y1 = jax.random.normal(k2, (N, Cout, H, W), dtype=jnp.float32)
    w1 = 0.1 * jax.random.normal(k3, (Cout, Cin, 1, 1), dtype=jnp.float32)
    b1 = 0.01 * jnp.arange(Cout, dtype=jnp.float32)

    out1 = shortcut_forward(x1, y1, in_filters=Cin, nb_filters=Cout,
                            subsample=1, conv_w=w1, conv_b=b1)
    out1 = jax.block_until_ready(out1)
    ref1 = _reference(x1, y1, in_filters=Cin, nb_filters=Cout, subsample=1,
                      conv_w=w1, conv_b=b1)
    np.testing.assert_allclose(np.asarray(out1), np.asarray(ref1),
                               rtol=1e-5, atol=1e-5)
    assert out1.shape == (N, Cout, H, W)

    # Case 2: projection path with subsample = 2 (strided 1x1 conv).
    y2 = jax.random.normal(k4, (N, Cout, H // 2, W // 2), dtype=jnp.float32)
    out2 = shortcut_forward(x1, y2, in_filters=Cin, nb_filters=Cout,
                            subsample=2, conv_w=w1, conv_b=b1)
    out2 = jax.block_until_ready(out2)
    ref2 = _reference(x1, y2, in_filters=Cin, nb_filters=Cout, subsample=2,
                      conv_w=w1, conv_b=b1)
    np.testing.assert_allclose(np.asarray(out2), np.asarray(ref2),
                               rtol=1e-5, atol=1e-5)
    assert out2.shape == (N, Cout, H // 2, W // 2)

    # Case 3: identity path (in_filters == nb_filters, subsample == 1): x + y.
    x3 = jax.random.normal(k5, (N, Cin, H, W), dtype=jnp.float32)
    y3 = jax.random.normal(k6, (N, Cin, H, W), dtype=jnp.float32)
    out3 = shortcut_forward(x3, y3, in_filters=Cin, nb_filters=Cin, subsample=1)
    out3 = jax.block_until_ready(out3)
    np.testing.assert_allclose(np.asarray(out3), np.asarray(x3 + y3),
                               rtol=1e-6, atol=1e-6)

    print("KERNEL_OK")
</pallas_src>

<mosaic_0001>
module attributes {stable_mosaic.version = 11 : i64} {
  func.func @_proj_add_kernel(%arg0: i32, %arg1: i32, %arg2: memref<1x4x256xf32, #tpu.memory_space<vmem>>, %arg3: memref<8x4xf32, #tpu.memory_space<vmem>>, %arg4: memref<8x1xf32, #tpu.memory_space<vmem>>, %arg5: memref<1x8x256xf32, #tpu.memory_space<vmem>>, %arg6: memref<1x8x256xf32, #tpu.memory_space<vmem>>) attributes {dimension_semantics = [#tpu.dimension_semantics<parallel>, #tpu.dimension_semantics<parallel>], iteration_bounds = array<i64: 2, 1>, scalar_prefetch = 0 : i64, scratch_operands = 0 : i64, tpu.core_type = #tpu.core_type<tc>, window_params = [{transform_indices = @transform_0, window_bounds = array<i64: 1, 4, 256>}, {pipeline_mode = #tpu.pipeline_mode<synchronous>, transform_indices = @transform_1, window_bounds = array<i64: 8, 4>}, {pipeline_mode = #tpu.pipeline_mode<synchronous>, transform_indices = @transform_2, window_bounds = array<i64: 8, 1>}, {transform_indices = @transform_3, window_bounds = array<i64: 1, 8, 256>}, {transform_indices = @transform_4, window_bounds = array<i64: 1, 8, 256>}]} {
    %c0 = arith.constant 0 : index
    %c0_0 = arith.constant 0 : index
    %0 = vector.load %arg3[%c0, %c0_0] : memref<8x4xf32, #tpu.memory_space<vmem>>, vector<8x4xf32>
    %c0_1 = arith.constant 0 : index
    %c0_2 = arith.constant 0 : index
    %c0_3 = arith.constant 0 : index
    %1 = vector.load %arg2[%c0_1, %c0_2, %c0_3] : memref<1x4x256xf32, #tpu.memory_space<vmem>>, vector<1x4x256xf32>
    %2 = vector.shape_cast %1 : vector<1x4x256xf32> to vector<4x256xf32>
    %cst = arith.constant dense<0.000000e+00> : vector<8x256xf32>
    %3 = tpu.matmul %0, %2, %cst {dimension_numbers = #tpu.dot_dimension_numbers<[1], [0], [0], [1], [0, 0, 1, 1], [], []>} : vector<8x4xf32>, vector<4x256xf32>, vector<8x256xf32> -> vector<8x256xf32>
    %c0_4 = arith.constant 0 : index
    %c0_5 = arith.constant 0 : index
    %4 = vector.load %arg4[%c0_4, %c0_5] : memref<8x1xf32, #tpu.memory_space<vmem>>, vector<8x1xf32>
    %5 = vector.broadcast %4 : vector<8x1xf32> to vector<8x256xf32>
    %6 = arith.addf %3, %5 : vector<8x256xf32>
    %c0_6 = arith.constant 0 : index
    %c0_7 = arith.constant 0 : index
    %c0_8 = arith.constant 0 : index
    %7 = vector.load %arg5[%c0_6, %c0_7, %c0_8] : memref<1x8x256xf32, #tpu.memory_space<vmem>>, vector<1x8x256xf32>
    %8 = vector.shape_cast %7 : vector<1x8x256xf32> to vector<8x256xf32>
    %9 = arith.addf %6, %8 : vector<8x256xf32>
    %c0_9 = arith.constant 0 : index
    %c0_10 = arith.constant 0 : index
    %c0_11 = arith.constant 0 : index
    %10 = vector.load %arg6[%c0_9, %c0_10, %c0_11] : memref<1x8x256xf32, #tpu.memory_space<vmem>>, vector<1x8x256xf32>
    %11 = vector.shape_cast %10 : vector<1x8x256xf32> to vector<8x256xf32>
    %12 = vector.shape_cast %9 : vector<8x256xf32> to vector<1x8x256xf32>
    tpu.vector_store %arg6[%c0_9, %c0_10, %c0_11], %12 {strides = array<i32>} : memref<1x8x256xf32, #tpu.memory_space<vmem>>, vector<1x8x256xf32>,
    return
  }
  func.func @transform_0(%arg0: i32, %arg1: i32) -> (i32, i32, i32) {
    %c0_i32 = arith.constant 0 : i32
    %c0_i32_0 = arith.constant 0 : i32
    return %arg0, %c0_i32, %arg1 : i32, i32, i32
  }
  func.func @transform_1(%arg0: i32, %arg1: i32) -> (i32, i32) {
    %c0_i32 = arith.constant 0 : i32
    %c0_i32_0 = arith.constant 0 : i32
    %c0_i32_1 = arith.constant 0 : i32
    return %c0_i32, %c0_i32_0 : i32, i32
  }
  func.func @transform_2(%arg0: i32, %arg1: i32) -> (i32, i32) {
    %c0_i32 = arith.constant 0 : i32
    %c0_i32_0 = arith.constant 0 : i32
    %c0_i32_1 = arith.constant 0 : i32
    return %c0_i32, %c0_i32_0 : i32, i32
  }
  func.func @transform_3(%arg0: i32, %arg1: i32) -> (i32, i32, i32) {
    %c0_i32 = arith.constant 0 : i32
    %c0_i32_0 = arith.constant 0 : i32
    return %arg0, %c0_i32, %arg1 : i32, i32, i32
  }
  func.func @transform_4(%arg0: i32, %arg1: i32) -> (i32, i32, i32) {
    %c0_i32 = arith.constant 0 : i32
    %c0_i32_0 = arith.constant 0 : i32
    return %arg0, %c0_i32, %arg1 : i32, i32, i32
  }
}

</mosaic_0001>

<llo_original>
// kernel: tpu_custom_call.1
$region0: #{tpu_custom_call.1}
  #allocation0 [shape = 'u32[]', space=smem, size = 0x4, offset = 0x4, fixed_abs, tag = 'smem constant byte address 0x4 - core index']
  #allocation1 [shape = 'u32[144,128]{1,0:T(1,128)}', space=vmem, size = 0x12000, scoped, tag = 'internal scratch']
  %s0 = inlined_call_operand.vmem [shape: f32[2,4,256], index: 0, kind: input, shape index: {}]
  %s1 = inlined_call_operand.vmem [shape: f32[8,4], index: 1, kind: input, shape index: {}]
  %s2 = inlined_call_operand.vmem [shape: f32[8,1], index: 2, kind: input, shape index: {}]
  %s3 = inlined_call_operand.hbm [shape: f32[2,8,256], index: 3, kind: input, shape index: {}, may-alias: {3,4}]
  %s4 = inlined_call_operand.hbm [shape: f32[2,8,256], index: 4, kind: output, shape index: {}, may-alias: {3,4}]
  %s5 = sld [smem:[#allocation0]]
  $region53: #{tpu_custom_call.1} parent=0
    _
  %s7 = ssub.s32 1, %s5
  %s8 = scalar_select 0, %s7, %s5
  $region1: #{tpu_custom_call.1} parent=0
    #allocation2 [shape = 'u8[16384]{0}', space=vmem, size = 0x4000, scoped, tag = 'input window, operand 3']
    #allocation3 [shape = 's32[2]{0}', space=sflag, size = 0x8, scoped, tag = 'scoped memory for tpu_custom_call.1']
    #allocation4 [shape = 's32[2]{0}', space=sflag, size = 0x8, scoped, tag = 'scoped memory for tpu_custom_call.1']
    #allocation5 [shape = 'u8[16384]{0}', space=vmem, size = 0x4000, scoped, tag = 'output window, operand 0']
    %9 = vsyncpa [#allocation3], 0
    %s10 = scalar_lea.sflag [#allocation3], 1
    %11 = vsyncpa %s10, 0
    %12 = vsyncpa [#allocation4], 0
    %s13 = scalar_lea.sflag [#allocation4], 1
    %14 = vsyncpa %s13, 0
    loop: start=0, step=1, limit=4
    $region2: #{tpu_custom_call.1} parent=1 // loop_pre_header
      _
    $region3: #{tpu_custom_call.1} parent=1 // loop_header
      %s16 = sphi 0, %s20
      %p17 = scmp.ge.s32.totalorder %s16, 4
      %s23 = sphi 0, %s35
      %s24 = sphi 0, %s31
      %s25 = sphi 0, %s23
      %s26 = sphi 0, %s24
      %s27 = sphi 0, %s25
      %s28 = sphi 0, %s26
      %s40 = sphi 0, %s42
      %s43 = sphi 0, %s40
      %s44 = sphi 0, %s43
      %s60 = sphi 0, %s44
      %s64 = sphi 0, %s64
      %s66 = sphi 0, %s64
      %s67 = sphi 0, %s66
      %s81 = sphi 0, %s67
      %s85 = sphi 0, %s85
      %s87 = sphi 0, %s85
      %s88 = sphi 0, %s87
      %s102 = sphi 0, %s88
      %s110 = sphi 0, %s112
      %s113 = sphi 0, %s110
      %s114 = sphi 0, %s113
      %s130 = sphi 0, %s114
      %s138 = sphi 0, %s140
      %s141 = sphi 0, %s138
      %s142 = sphi 0, %s141
      %s158 = sphi 0, %s142
    $region4: #{tpu_custom_call.1} parent=1 // loop_header_branch
      %19 = sbr.rel (%p17) target = $region8
    $region5: #{tpu_custom_call.1} parent=1 // loop_body
      %s21 = ssub.s32 %s16, 1
      %s22 = ssub.s32 %s16, 2
      %s29 = sadd.s32 1, %s24
      %p30 = scmp.ge.s32.totalorder %s29, 1
      %s31 = scalar_select %p30, 0, %s29
      %s32 = sadd.s32 1, %s23
      %s33 = scalar_select %p30, %s32, %s23
      %p34 = scmp.ge.s32.totalorder %s33, 2
      %s35 = scalar_select %p34, 0, %s33
      %s36 = ssub.s32 %s23, %s35
      %s37 = ssub.s32 %s24, %s31
      %s38 = sor.u32 %s36, %s37
      %p39 = scmp.eq.s32.totalorder %s38, 0
      %s41 = sadd.s32 %s40, 1
      %s42 = scalar_select %p39, %s40, %s41
      %p45 = pneg %p39
      %p46 = scmp.eq.s32.totalorder %s16, 1
      %p47 = por %p45, %p46
      %p48 = scmp.ne.s32.totalorder %s40, %s43
      %p49 = scmp.eq.s32.totalorder %s16, 0
      %p50 = por %p48, %p49
      %p51 = scmp.ne.s32.totalorder %s40, %s43
      %p52 = scmp.eq.s32.totalorder %s21, 1
      %p53 = por %p51, %p52
      %p54 = scmp.ne.s32.totalorder %s43, %s44
      %p55 = scmp.eq.s32.totalorder %s21, 0
      %p56 = por %p54, %p55
      %p57 = scmp.ne.s32.totalorder %s43, %s44
      %p58 = scmp.eq.s32.totalorder %s22, 1
      %p59 = por %p57, %p58
      %p61 = scmp.ne.s32.totalorder %s44, %s60
      %p62 = scmp.eq.s32.totalorder %s22, 0
      %p63 = por %p61, %p62
      %s65 = sadd.s32 %s64, 1
      %p68 = scmp.eq.s32.totalorder %s16, 1
      %p69 = scmp.ne.s32.totalorder %s64, %s66
      %p70 = scmp.eq.s32.totalorder %s16, 0
      %p71 = por %p69, %p70
      %p72 = scmp.ne.s32.totalorder %s64, %s66
      %p73 = scmp.eq.s32.totalorder %s21, 1
      %p74 = por %p72, %p73
      %p75 = scmp.ne.s32.totalorder %s66, %s67
      %p76 = scmp.eq.s32.totalorder %s21, 0
      %p77 = por %p75, %p76
      %p78 = scmp.ne.s32.totalorder %s66, %s67
      %p79 = scmp.eq.s32.totalorder %s22, 1
      %p80 = por %p78, %p79
      %p82 = scmp.ne.s32.totalorder %s67, %s81
      %p83 = scmp.eq.s32.totalorder %s22, 0
      %p84 = por %p82, %p83
      %s86 = sadd.s32 %s85, 1
      %p89 = scmp.eq.s32.totalorder %s16, 1
      %p90 = scmp.ne.s32.totalorder %s85, %s87
      %p91 = scmp.eq.s32.totalorder %s16, 0
      %p92 = por %p90, %p91
      %p93 = scmp.ne.s32.totalorder %s85, %s87
      %p94 = scmp.eq.s32.totalorder %s21, 1
      %p95 = por %p93, %p94
      %p96 = scmp.ne.s32.totalorder %s87, %s88
      %p97 = scmp.eq.s32.totalorder %s21, 0
      %p98 = por %p96, %p97
      %p99 = scmp.ne.s32.totalorder %s87, %s88
      %p100 = scmp.eq.s32.totalorder %s22, 1
      %p101 = por %p99, %p100
      %p103 = scmp.ne.s32.totalorder %s88, %s102
      %p104 = scmp.eq.s32.totalorder %s22, 0
      %p105 = por %p103, %p104
      %s106 = ssub.s32 %s23, %s35
      %s107 = ssub.s32 %s24, %s31
      %s108 = sor.u32 %s106, %s107
      %p109 = scmp.eq.s32.totalorder %s108, 0
      %s111 = sadd.s32 %s110, 1
      %s112 = scalar_select %p109, %s110, %s111
      %p115 = pneg %p109
      %p116 = scmp.eq.s32.totalorder %s16, 1
      %p117 = por %p115, %p116
      %p118 = scmp.ne.s32.totalorder %s110, %s113
      %p119 = scmp.eq.s32.totalorder %s16, 0
      %p120 = por %p118, %p119
      %p121 = scmp.ne.s32.totalorder %s110, %s113
      %p122 = scmp.eq.s32.totalorder %s21, 1
      %p123 = por %p121, %p122
      %p124 = scmp.ne.s32.totalorder %s113, %s114
      %p125 = scmp.eq.s32.totalorder %s21, 0
      %p126 = por %p124, %p125
      %p127 = scmp.ne.s32.totalorder %s113, %s114
      %p128 = scmp.eq.s32.totalorder %s22, 1
      %p129 = por %p127, %p128
      %p131 = scmp.ne.s32.totalorder %s114, %s130
      %p132 = scmp.eq.s32.totalorder %s22, 0
      %p133 = por %p131, %p132
      %s134 = ssub.s32 %s23, %s35
      %s135 = ssub.s32 %s24, %s31
      %s136 = sor.u32 %s134, %s135
      %p137 = scmp.eq.s32.totalorder %s136, 0
      %s139 = sadd.s32 %s138, 1
      %s140 = scalar_select %p137, %s138, %s139
      %p143 = pneg %p137
      %p144 = scmp.eq.s32.totalorder %s16, 1
      %p145 = por %p143, %p144
      %p146 = scmp.ne.s32.totalorder %s138, %s141
      %p147 = scmp.eq.s32.totalorder %s16, 0
      %p148 = por %p146, %p147
      %p149 = scmp.ne.s32.totalorder %s138, %s141
      %p150 = scmp.eq.s32.totalorder %s21, 1
      %p151 = por %p149, %p150
      %p152 = scmp.ne.s32.totalorder %s141, %s142
      %p153 = scmp.eq.s32.totalorder %s21, 0
      %p154 = por %p152, %p153
      %p155 = scmp.ne.s32.totalorder %s141, %s142
      %p156 = scmp.eq.s32.totalorder %s22, 1
      %p157 = por %p155, %p156
      %p159 = scmp.ne.s32.totalorder %s142, %s158
      %p160 = scmp.eq.s32.totalorder %s22, 0
      %p161 = por %p159, %p160
      %p162 = scmp.le.s32.totalorder 1, %s16
      %p163 = scmp.lt.s32.totalorder %s16, 3
      %p164 = pnand %p162, %p163
      %p165 = pneg %p164
      // Predicated region
      $region9: #{tpu_custom_call.1} parent=5 // pred_check
        _
      $region10: #{tpu_custom_call.1} parent=5 // pred_check_branch
        %167 = sbr.rel (%p164) target = $region12
      $region11: #{tpu_custom_call.1} parent=5 // pred_region
        %s168 = ssub.s32 %s16, 1
        // Predicated region
        $region13: #{tpu_custom_call.1} parent=11 // pred_check
          %p169 = pneg %p77
        $region14: #{tpu_custom_call.1} parent=11 // pred_check_branch
          %171 = sbr.rel (%p169) target = $region16
        $region15: #{tpu_custom_call.1} parent=11 // pred_region
          _
        $region16: #{tpu_custom_call.1} parent=11 // pred_fallthru
          _
        // Predicated region
        $region17: #{tpu_custom_call.1} parent=11 // pred_check
          %p172 = pneg %p98
        $region18: #{tpu_custom_call.1} parent=11 // pred_check_branch
          %174 = sbr.rel (%p172) target = $region20
        $region19: #{tpu_custom_call.1} parent=11 // pred_region
          _
        $region20: #{tpu_custom_call.1} parent=11 // pred_fallthru
          _
      $region12: #{tpu_custom_call.1} parent=5 // pred_fallthru
        _
      %p175 = scmp.lt.s32.totalorder %s16, 2
      // Predicated region
      $region21: #{tpu_custom_call.1} parent=5 // pred_check
        %p176 = pneg %p175
      $region22: #{tpu_custom_call.1} parent=5 // pred_check_branch
        %178 = sbr.rel (%p176) target = $region24
      $region23: #{tpu_custom_call.1} parent=5 // pred_region
        // Predicated region
        $region25: #{tpu_custom_call.1} parent=23 // pred_check
          %p179 = pneg %p50
        $region26: #{tpu_custom_call.1} parent=23 // pred_check_branch
          %181 = sbr.rel (%p179) target = $region28
        $region27: #{tpu_custom_call.1} parent=23 // pred_region
          %s182 = smul.u32 2, %s24
          %p183 = scmp.lt.s32.totalorder %s23, 1
          %s184 = scalar_select %p183, %s23, 1
          %p185 = scmp.lt.s32.totalorder %s182, 1
          %s186 = scalar_select %p185, %s182, 1
          %s187 = smul.addr %s184, 2
          %s188 = sadd.s32 %s186, %s187
          %s189 = smul.addr %s188, 4
          %s190 = scalar_lea.vmem %s0, %s189
          %s191 = smul.u32 2, %s24
        $region28: #{tpu_custom_call.1} parent=23 // pred_fallthru
          _
        // Predicated region
        $region29: #{tpu_custom_call.1} parent=23 // pred_check
          %p192 = pneg %p120
        $region30: #{tpu_custom_call.1} parent=23 // pred_check_branch
          %194 = sbr.rel (%p192) target = $region32
        $region31: #{tpu_custom_call.1} parent=23 // pred_region
          %s195 = sand.u32 %s110, 1
          %s196 = scalar_lea.sflag [#allocation3], %s195
          %s197 = sand.u32 %s110, 1
          %s198 = smul.addr %s197, 16
          %s199 = scalar_lea.vmem [#allocation2], %s198
          %s200 = smul.u32 2, %s24
          %s202 = ssub.s32 256, 256
          %203 = vsyncadd %s196, %s202
          %s204 = smul.addr %s23, 2
          %s205 = sadd.s32 %s200, %s204
          %s206 = smul.addr %s205, 128
          %s207 = scalar_lea.hbm %s3, %s206
          %s209 = sshll.u32 %s199, 4
          %s210 = int_to_ptr.vmem [resolvable:$true] %s209
          %212 = dma.hbm_to_vmem [thread:$0]  %s207, 256, %s210, %s196
        $region32: #{tpu_custom_call.1} parent=23 // pred_fallthru
          _
      $region24: #{tpu_custom_call.1} parent=5 // pred_fallthru
        _
      %p213 = scmp.le.s32.totalorder 1, %s16
      %p214 = scmp.lt.s32.totalorder %s16, 3
      %p215 = pnand %p213, %p214
      %p216 = pneg %p215
      // Predicated region
      $region33: #{tpu_custom_call.1} parent=5 // pred_check
        _
      $region34: #{tpu_custom_call.1} parent=5 // pred_check_branch
        %218 = sbr.rel (%p215) target = $region36
      $region35: #{tpu_custom_call.1} parent=5 // pred_region
        %s219 = ssub.s32 %s16, 1
        %s220 = sand.u32 %s113, 1
        %s221 = scalar_lea.sflag [#allocation3], %s220
        %s222 = sand.u32 %s113, 1
        %s223 = smul.addr %s222, 16
        %s224 = scalar_lea.vmem [#allocation2], %s223
        // Predicated region
        $region37: #{tpu_custom_call.1} parent=35 // pred_check
          %p225 = pneg %p126
        $region38: #{tpu_custom_call.1} parent=35 // pred_check_branch
          %227 = sbr.rel (%p225) target = $region40
        $region39: #{tpu_custom_call.1} parent=35 // pred_region
          %228 = dma.done %s221, 256
        $region40: #{tpu_custom_call.1} parent=35 // pred_fallthru
          _
        %s229 = smul.u32 2, %s26
        %p230 = scmp.lt.s32.totalorder %s25, 1
        %s231 = scalar_select %p230, %s25, 1
        %p232 = scmp.lt.s32.totalorder %s229, 1
        %s233 = scalar_select %p232, %s229, 1
        %s234 = smul.addr %s231, 2
        %s235 = sadd.s32 %s233, %s234
        %s236 = smul.addr %s235, 4
        %s237 = scalar_lea.vmem %s0, %s236
        %p238 = pneg %p56
        %p239 = pneg %p53
        %p240 = pneg %p77
        %p241 = pneg %p74
        %p242 = pneg %p98
        %p243 = pneg %p95
        %s244 = sand.u32 %s113, 1
        %s245 = scalar_lea.sflag [#allocation3], %s244
        %s246 = sand.u32 %s113, 1
        %s247 = smul.addr %s246, 16
        %s248 = scalar_lea.vmem [#allocation2], %s247
        %p249 = pneg %p126
        %p250 = pneg %p123
        %p251 = pneg %p154
        %p252 = pneg %p151
        %s253 = sand.u32 %s141, 1
        %s254 = scalar_lea.sflag [#allocation4], %s253
        %s255 = sand.u32 %s141, 1
        %s256 = smul.addr %s255, 16
        %s257 = scalar_lea.vmem [#allocation5], %s256
        %s258 = smul.u32 2, %s26
        %p259 = scmp.lt.s32.totalorder %s25, 1
        %s260 = scalar_select %p259, %s25, 1
        %p261 = scmp.lt.s32.totalorder %s258, 1
        %s262 = scalar_select %p261, %s258, 1
        %s263 = smul.addr %s260, 2
        %s264 = sadd.s32 %s262, %s263
        %s265 = smul.addr %s264, 4
        %s266 = scalar_lea.vmem %s0, %s265
        %s267 = smul.u32 2, %s26
        %s268 = smul.u32 2, %s26
        %s269 = smul.u32 2, %s26
        %v270 = vld [vmem:[%s1] sm:$0xff]
        %v271 = vld [vmem:[%s266] sm:$0xff]
        %v272 = vld [vmem:[%s2] sm:$0xff]
        %274 = vset.pattern.permute.xlu0 0
        %275 = vperm.xlu0 %274, %v272
        %v276 = vpop.permute.xlu0 %275
        %v279 = vcombine.high %v271, %v271
        %vm280 = vcmask 31744
        %v282 = vsel %vm280, %v270, 0
        %vm284 = vcmask 1043456
        %v285 = vsel %vm284, %v271, 0
        %v287 = vsel %vm284, %v279, 0
        %289 = vmatprep.subr.mxu0 0.0
        %290 = vmatpush1.msra.mxu0 0.0
        %291 = vmatprep.subr.mxu0 0.0
        %292 = vmatpush1.msra.mxu0 0.0
        %293 = vmatprep.subr.mxu0 0.0
        %294 = vmatpush1.msra.mxu0 0.0
        %295 = vmatprep.subr.mxu0 0.0
        %296 = vmatpush1.msra.mxu0 0.0
        %297 = vmatprep.subr.mxu0 0.0
        %298 = vmatpush1.msra.mxu0 0.0
        %299 = vmatprep.subr.mxu0 0.0
        %300 = vmatpush1.msra.mxu0 0.0
        %301 = vmatprep.subr.mxu0 0.0
        %302 = vmatpush1.msra.mxu0 0.0
        %303 = vmatprep.subr.mxu0 0.0
        %304 = vmatpush1.msra.mxu0 0.0
        %305 = vmatprep.subr.mxu0 0.0
        %306 = vmatpush1.msra.mxu0 0.0
        %307 = vmatprep.subr.mxu0 0.0
        %308 = vmatpush1.msra.mxu0 0.0
        %309 = vmatprep.subr.mxu0 0.0
        %310 = vmatpush1.msra.mxu0 0.0
        %311 = vmatprep.subr.mxu0 0.0
        %312 = vmatpush1.msra.mxu0 0.0
        %313 = vmatprep.subr.mxu0 0.0
        %314 = vmatpush1.msra.mxu0 0.0
        %315 = vmatprep.subr.mxu0 0.0
        %316 = vmatpush1.msra.mxu0 0.0
        %317 = vmatprep.subr.mxu0 0.0
        %318 = vmatpush1.msra.mxu0 0.0
        %319 = vmatprep.subr.mxu0 %v287
        %320 = vmatpush1.msra.mxu0 %v285
        %321 = vmatprep.subr.mxu0 0.0
        %322 = vmatpush2.msra.mxu0 0.0
        %323 = vmatprep.subr.mxu0 0.0
        %324 = vmatpush2.msra.mxu0 0.0
        %325 = vmatprep.subr.mxu0 0.0
        %326 = vmatpush2.msra.mxu0 0.0
        %327 = vmatprep.subr.mxu0 0.0
        %328 = vmatpush2.msra.mxu0 0.0
        %329 = vmatprep.subr.mxu0 0.0
        %330 = vmatpush2.msra.mxu0 0.0
        %331 = vmatprep.subr.mxu0 0.0
        %332 = vmatpush2.msra.mxu0 0.0
        %333 = vmatprep.subr.mxu0 0.0
        %334 = vmatpush2.msra.mxu0 0.0
        %335 = vmatprep.subr.mxu0 0.0
        %336 = vmatpush2.msra.mxu0 0.0
        %337 = vmatprep.subr.mxu0 0.0
        %338 = vmatpush2.msra.mxu0 0.0
        %339 = vmatprep.subr.mxu0 0.0
        %340 = vmatpush2.msra.mxu0 0.0
        %341 = vmatprep.subr.mxu0 0.0
        %342 = vmatpush2.msra.mxu0 0.0
        %343 = vmatprep.subr.mxu0 0.0
        %344 = vmatpush2.msra.mxu0 0.0
        %345 = vmatprep.subr.mxu0 0.0
        %346 = vmatpush2.msra.mxu0 0.0
        %347 = vmatprep.subr.mxu0 0.0
        %348 = vmatpush2.msra.mxu0 0.0
        %349 = vmatprep.subr.mxu0 0.0
        %350 = vmatpush2.msra.mxu0 0.0
        %351 = vmatprep.subr.mxu0 0.0
        %352 = vmatpush2.msra.mxu0 0.0
        %353 = vmatprep.mubr.f32.mxu0 0.0
        %354 = vmatmul.mubr.f32.gmra.mxu0 %v282
        %v355 = vpop.f32.mrf.mxu0
        %v356 = vadd.f32 %v276, %v355
        %v357 = vpop.f32.mrf.mxu0
        %v358 = vadd.f32 %v276, %v357
        %359 = vdwg.mxu0
        %v360 = vld [vmem:[%s224] sm:$0xff]
        %v361 = vld [vmem:[%s224 + $0x8] sm:$0xff]
        %v362 = vadd.f32 %v356, %v360
        %v363 = vadd.f32 %v358, %v361
        %364 = vst [vmem:[%s257] sm:$0xff] %v362
        %365 = vst [vmem:[%s257 + $0x8] sm:$0xff] %v363
        %s366 = sand.u32 %s141, 1
        %s367 = scalar_lea.sflag [#allocation4], %s366
        %s368 = sand.u32 %s141, 1
        %s369 = smul.addr %s368, 16
        %s370 = scalar_lea.vmem [#allocation5], %s369
        // Predicated region
        $region41: #{tpu_custom_call.1} parent=35 // pred_check
          %p371 = pneg %p151
        $region42: #{tpu_custom_call.1} parent=35 // pred_check_branch
          %373 = sbr.rel (%p371) target = $region44
        $region43: #{tpu_custom_call.1} parent=35 // pred_region
          %s374 = smul.u32 2, %s26
          %s376 = ssub.s32 256, 256
          %377 = vsyncadd %s367, %s376
          %s378 = smul.addr %s25, 2
          %s379 = sadd.s32 %s374, %s378
          %s380 = smul.addr %s379, 128
          %s381 = scalar_lea.hbm %s4, %s380
          %s383 = sshll.u32 %s370, 4
          %s384 = int_to_ptr.vmem [resolvable:$true] %s383
          %386 = dma.vmem_to_hbm [thread:$0]  %s384, 256, %s381, %s367
        $region44: #{tpu_custom_call.1} parent=35 // pred_fallthru
          _
      $region36: #{tpu_custom_call.1} parent=5 // pred_fallthru
        _
      %p387 = scmp.le.s32.totalorder 2, %s16
      // Predicated region
      $region45: #{tpu_custom_call.1} parent=5 // pred_check
        %p388 = pneg %p387
      $region46: #{tpu_custom_call.1} parent=5 // pred_check_branch
        %390 = sbr.rel (%p388) target = $region48
      $region47: #{tpu_custom_call.1} parent=5 // pred_region
        %s391 = ssub.s32 %s16, 2
        // Predicated region
        $region49: #{tpu_custom_call.1} parent=47 // pred_check
          %p392 = pneg %p157
        $region50: #{tpu_custom_call.1} parent=47 // pred_check_branch
          %394 = sbr.rel (%p392) target = $region52
        $region51: #{tpu_custom_call.1} parent=47 // pred_region
          %s395 = sand.u32 %s142, 1
          %s396 = scalar_lea.sflag [#allocation4], %s395
          %s397 = sand.u32 %s142, 1
          %s398 = smul.addr %s397, 16
          %s399 = scalar_lea.vmem [#allocation5], %s398
          %400 = dma.done %s396, 256
        $region52: #{tpu_custom_call.1} parent=47 // pred_fallthru
          _
      $region48: #{tpu_custom_call.1} parent=5 // pred_fallthru
        _
    $region6: #{tpu_custom_call.1} parent=1 // loop_footer
      %s20 = sadd.s32 1, %s16
    $region7: #{tpu_custom_call.1} parent=1 // loop_footer_branch
      %15 = sbr.rel target = $region3
    $region8: #{tpu_custom_call.1} parent=1 // loop_exit
      _
    %401 = vsyncpa [#allocation3], 1
    %s402 = scalar_lea.sflag [#allocation3], 1
    %403 = vsyncpa %s402, 1
    %404 = vsyncpa [#allocation4], 1
    %s405 = scalar_lea.sflag [#allocation4], 1
    %406 = vsyncpa %s405, 1

</llo_original>
